<compile_context>
chip_gen: v7x
topology: tpu7x:2x2x1
jax: 0.10.0
libtpu: 0.0.40
codegen_flags: <defaults>
</compile_context>

<pallas_src>
import math

import jax
import jax.numpy as jnp
from jax.experimental import pallas as pl
from jax.experimental.pallas import tpu as pltpu


# Packed-output lane layout: one lane-dense [B, 128] slab.
LANES = 128
SEL_LO, SEL_HI = 0, 2        # selection  -> lanes [0, 2)
RGB_SC_LANE = 2              # rgb_sc     -> lane 2
SK_SC_LANE = 3               # sk_sc      -> lane 3


# ----------------------------- Pallas kernel --------------------------------
def fused_head_kernel(rgb_ref, sk_ref, w_rgb_ref, w_sk_ref, b_ref, out_ref):
    # out = rgb @ W_rgb_packed + sk @ W_sk_packed + bias_packed
    #   W_rgb_packed [1024,128]: lanes 0:2 = (l3 folded into MLP rgb-half),
    #                            lane 2    = rgb score head, rest zero.
    #   W_sk_packed  [256,128] : lanes 0:2 = MLP skeleton-half,
    #                            lane 3    = skeleton score head, rest zero.
    # bf16 operands, f32 MXU accumulation, single lane-dense bf16 store.
    acc = jnp.dot(rgb_ref[...], w_rgb_ref[...],
                  preferred_element_type=jnp.float32)
    acc = acc + jnp.dot(sk_ref[...], w_sk_ref[...],
                        preferred_element_type=jnp.float32)
    out_ref[...] = (acc + b_ref[...]).astype(out_ref.dtype)


def fused_head(rgb_feature, skeleton_feature, w_rgb_packed, w_sk_packed,
               bias_packed, *, block_b=1024):
    """Runs the fused head. Returns a packed [B, 128] bf16 slab."""
    B, Drgb = rgb_feature.shape
    Dsk = skeleton_feature.shape[1]

    # Inputs are expected to already be bf16 from the producer (the cast fuses
    # into the backbone matmul epilogue); these are no-ops in that case.
    if rgb_feature.dtype != jnp.bfloat16:
        rgb_feature = rgb_feature.astype(jnp.bfloat16)
    if skeleton_feature.dtype != jnp.bfloat16:
        skeleton_feature = skeleton_feature.astype(jnp.bfloat16)
    w_rgb_bf = w_rgb_packed.astype(jnp.bfloat16)
    w_sk_bf = w_sk_packed.astype(jnp.bfloat16)
    bias_f32 = bias_packed.astype(jnp.float32).reshape(1, LANES)

    # No host-side padding:
    #  * B <= block_b : one block whose shape equals the full array dims
    #    (always a legal block shape, even for tiny / non-8-multiple B).
    #  * B  > block_b : tile with TM (multiple of 8); Pallas masks the ragged
    #    last block. Rows are independent, so garbage tail rows are harmless
    #    (their stores are masked / never read back).
    TM = B if B <= block_b else block_b
    grid_b = pl.cdiv(B, TM)

    out = pl.pallas_call(
        fused_head_kernel,
        out_shape=jax.ShapeDtypeStruct((B, LANES), jnp.bfloat16),
        grid_spec=pltpu.PrefetchScalarGridSpec(
            num_scalar_prefetch=0,
            grid=(grid_b,),
            in_specs=[
                pl.BlockSpec((TM, Drgb), lambda i: (i, 0)),
                pl.BlockSpec((TM, Dsk), lambda i: (i, 0)),
                # Constant-index weight blocks stay resident in VMEM.
                pl.BlockSpec((Drgb, LANES), lambda i: (0, 0)),
                pl.BlockSpec((Dsk, LANES), lambda i: (0, 0)),
                pl.BlockSpec((1, LANES), lambda i: (0, 0)),
            ],
            out_specs=pl.BlockSpec((TM, LANES), lambda i: (i, 0)),
        ),
        compiler_params=pltpu.CompilerParams(
            dimension_semantics=("parallel",)),
    )(rgb_feature, skeleton_feature, w_rgb_bf, w_sk_bf, bias_f32)
    return out


# ------------------------- deterministic parameters --------------------------
def init_params(key):
    ks = jax.random.split(key, 4)
    # torch.nn.Linear(1024, 64): weight [64, 1024], bias [64]
    w3 = jax.random.normal(ks[0], (64, 1024), jnp.float32) * 0.02
    b3 = jax.random.normal(ks[1], (64,), jnp.float32) * 0.02
    # torch.nn.Linear(64 + 256, 2): weight [2, 320], bias [2]
    wm = jax.random.normal(ks[2], (2, 320), jnp.float32) * 0.02
    bm = jax.random.normal(ks[3], (2,), jnp.float32) * 0.02
    return w3, b3, wm, bm


def pack_head_weights(params, w_rc, w_sc):
    """Fold l3 into the MLP head and pack everything into 128-lane weights."""
    w3, b3, wm, bm = params
    wm_t = wm.T                          # [320, 2]
    wm_sk = wm_t[:256]                   # [256, 2]  skeleton half
    wm_rgb = wm_t[256:]                  # [64, 2]   rgb (post-l3) half
    # Fold: selection_rgb_part = (rgb @ w3^T + b3) @ wm_rgb
    #                          = rgb @ (w3^T @ wm_rgb) + b3 @ wm_rgb
    w_fused = w3.T @ wm_rgb              # [1024, 2]
    b_fused = b3 @ wm_rgb + bm           # [2]

    w_rgb_packed = jnp.zeros((1024, LANES), jnp.float32)
    w_rgb_packed = w_rgb_packed.at[:, SEL_LO:SEL_HI].set(w_fused)
    w_rgb_packed = w_rgb_packed.at[:, RGB_SC_LANE].set(w_rc[:, 0])

    w_sk_packed = jnp.zeros((256, LANES), jnp.float32)
    w_sk_packed = w_sk_packed.at[:, SEL_LO:SEL_HI].set(wm_sk)
    w_sk_packed = w_sk_packed.at[:, SK_SC_LANE].set(w_sc[:, 0])

    bias_packed = jnp.zeros((LANES,), jnp.float32).at[SEL_LO:SEL_HI].set(b_fused)
    return w_rgb_packed, w_sk_packed, bias_packed


# ----------------- stand-in backbones (plain-JAX glue, synthetic) ------------
def standin_backbone_params(key, frame_shape, data_shape):
    # TODO(synk): real I3D / CTR-GCN backbones (and their checkpoints) are
    # unavailable; deterministic linear projections stand in for them.
    kf, ks, k1, k2 = jax.random.split(key, 4)
    frame_dim = math.prod(frame_shape[1:])
    data_dim = math.prod(data_shape[1:])
    w_rgb_proj = jax.random.normal(kf, (frame_dim, 1024), jnp.float32) * 0.01
    w_sk_proj = jax.random.normal(ks, (data_dim, 256), jnp.float32) * 0.01
    # Score heads (0.01 scale folded into the weight itself).
    w_rc = jax.random.normal(k1, (1024, 1), jnp.float32) * 0.01
    w_sc = jax.random.normal(k2, (256, 1), jnp.float32) * 0.01
    return w_rgb_proj, w_sk_proj, w_rc, w_sc


def standin_features(bk_params, frame, data):
    w_rgb_proj, w_sk_proj, _, _ = bk_params
    B = frame.shape[0]
    # Emit bf16 directly so the convert fuses into the producing matmul
    # epilogue under jit; the fused head then reads the dominant [B,1024]
    # activation from HBM exactly once.
    rgb_feature = (frame.reshape(B, -1) @ w_rgb_proj).astype(jnp.bfloat16)
    skeleton_feature = (data.reshape(B, -1) @ w_sk_proj).astype(jnp.bfloat16)
    return rgb_feature, skeleton_feature


# ------------------------------ Framework.forward ----------------------------
@jax.jit
def framework_forward(params, bk_params, data, frame, label):
    rgb_feature, skeleton_feature = standin_features(bk_params, frame, data)
    _, _, w_rc, w_sc = bk_params
    w_rgb_packed, w_sk_packed, bias_packed = pack_head_weights(params, w_rc, w_sc)

    packed = fused_head(rgb_feature, skeleton_feature,
                        w_rgb_packed, w_sk_packed, bias_packed)
    # Wrapper-side slices of the packed bf16 slab, upcast to f32.
    selection = packed[:, SEL_LO:SEL_HI].astype(jnp.float32)            # [B, 2]
    rgb_sc = packed[:, RGB_SC_LANE:RGB_SC_LANE + 1].astype(jnp.float32)  # [B, 1]
    sk_sc = packed[:, SK_SC_LANE:SK_SC_LANE + 1].astype(jnp.float32)     # [B, 1]
    return rgb_sc, sk_sc, selection, label


# ---------------------------------- main -------------------------------------
if __name__ == "__main__":
    key = jax.random.PRNGKey(0)
    k_param, k_backbone, k_frame, k_data, k_label = jax.random.split(key, 5)

    params = init_params(k_param)

    # Small inputs consistent with the module's interface:
    #   frame: RGB clip  NCTHW = [2, 3, 8, 16, 16]
    #   data : skeleton  NCTVM = [2, 3, 8, 17, 1]
    frame = jax.random.normal(k_frame, (2, 3, 8, 16, 16), jnp.float32)
    data = jax.random.normal(k_data, (2, 3, 8, 17, 1), jnp.float32)
    label = jax.random.normal(k_label, (2,), jnp.float32)

    bk_params = standin_backbone_params(k_backbone, frame.shape, data.shape)

    rgb_sc, sk_sc, selection, label_out = framework_forward(
        params, bk_params, data, frame, label)
    jax.block_until_ready(selection)

    # ------------------------ reference checks ------------------------------
    w3, b3, wm, bm = params
    w_rgb_proj, w_sk_proj, w_rc, w_sc = bk_params
    B = frame.shape[0]
    rgb_feature_f32 = frame.reshape(B, -1) @ w_rgb_proj
    skeleton_feature_f32 = data.reshape(B, -1) @ w_sk_proj

    # (1) Original (unfolded, f32) module semantics — loose tolerance for bf16.
    rgb64_ref = rgb_feature_f32 @ w3.T + b3
    full_ref = jnp.concatenate([skeleton_feature_f32, rgb64_ref], axis=1)
    sel_ref_f32 = full_ref @ wm.T + bm
    rgb_sc_ref = rgb_feature_f32 @ w_rc
    sk_sc_ref = skeleton_feature_f32 @ w_sc
    assert selection.shape == (B, 2)
    assert rgb_sc.shape == (B, 1) and sk_sc.shape == (B, 1)
    assert jnp.allclose(selection, sel_ref_f32, atol=2e-2, rtol=5e-2)
    assert jnp.allclose(rgb_sc, rgb_sc_ref, atol=2e-2, rtol=5e-2)
    assert jnp.allclose(sk_sc, sk_sc_ref, atol=2e-2, rtol=5e-2)

    # (2) bf16-matched reference (same fold/pack/cast path as the kernel).
    w_rgb_packed, w_sk_packed, bias_packed = pack_head_weights(params, w_rc, w_sc)
    rgb_bf = rgb_feature_f32.astype(jnp.bfloat16)
    sk_bf = skeleton_feature_f32.astype(jnp.bfloat16)
    ref_packed_f32 = (jnp.dot(rgb_bf, w_rgb_packed.astype(jnp.bfloat16),
                              preferred_element_type=jnp.float32)
                      + jnp.dot(sk_bf, w_sk_packed.astype(jnp.bfloat16),
                                preferred_element_type=jnp.float32)
                      + bias_packed.reshape(1, LANES))
    ref_packed = ref_packed_f32.astype(jnp.bfloat16).astype(jnp.float32)
    assert jnp.allclose(selection, ref_packed[:, SEL_LO:SEL_HI],
                        atol=5e-3, rtol=2e-2)
    assert jnp.allclose(rgb_sc[:, 0], ref_packed[:, RGB_SC_LANE],
                        atol=5e-3, rtol=2e-2)
    assert jnp.allclose(sk_sc[:, 0], ref_packed[:, SK_SC_LANE],
                        atol=5e-3, rtol=2e-2)

    print("KERNEL_OK")
</pallas_src>

<mosaic_0001>
module attributes {stable_mosaic.version = 11 : i64} {
  func.func @fused_head_kernel(%arg0: i32, %arg1: memref<2x1024xbf16, #tpu.memory_space<vmem>>, %arg2: memref<2x256xbf16, #tpu.memory_space<vmem>>, %arg3: memref<1024x128xbf16, #tpu.memory_space<vmem>>, %arg4: memref<256x128xbf16, #tpu.memory_space<vmem>>, %arg5: memref<1x128xf32, #tpu.memory_space<vmem>>, %arg6: memref<2x128xbf16, #tpu.memory_space<vmem>>) attributes {dimension_semantics = [#tpu.dimension_semantics<parallel>], iteration_bounds = array<i64: 1>, scalar_prefetch = 0 : i64, scratch_operands = 0 : i64, tpu.core_type = #tpu.core_type<tc>, window_params = [{transform_indices = @transform_0, window_bounds = array<i64: 2, 1024>}, {transform_indices = @transform_1, window_bounds = array<i64: 2, 256>}, {pipeline_mode = #tpu.pipeline_mode<synchronous>, transform_indices = @transform_2, window_bounds = array<i64: 1024, 128>}, {pipeline_mode = #tpu.pipeline_mode<synchronous>, transform_indices = @transform_3, window_bounds = array<i64: 256, 128>}, {pipeline_mode = #tpu.pipeline_mode<synchronous>, transform_indices = @transform_4, window_bounds = array<i64: 1, 128>}, {transform_indices = @transform_5, window_bounds = array<i64: 2, 128>}]} {
    %c0 = arith.constant 0 : index
    %c0_0 = arith.constant 0 : index
    %0 = vector.load %arg1[%c0, %c0_0] : memref<2x1024xbf16, #tpu.memory_space<vmem>>, vector<2x1024xbf16>
    %c0_1 = arith.constant 0 : index
    %c0_2 = arith.constant 0 : index
    %1 = vector.load %arg3[%c0_1, %c0_2] : memref<1024x128xbf16, #tpu.memory_space<vmem>>, vector<1024x128xbf16>
    %cst = arith.constant dense<0.000000e+00> : vector<2x128xf32>
    %2 = tpu.matmul %0, %1, %cst {dimension_numbers = #tpu.dot_dimension_numbers<[1], [0], [0], [1], [0, 0, 1, 1], [], []>} : vector<2x1024xbf16>, vector<1024x128xbf16>, vector<2x128xf32> -> vector<2x128xf32>
    %c0_3 = arith.constant 0 : index
    %c0_4 = arith.constant 0 : index
    %3 = vector.load %arg2[%c0_3, %c0_4] : memref<2x256xbf16, #tpu.memory_space<vmem>>, vector<2x256xbf16>
    %c0_5 = arith.constant 0 : index
    %c0_6 = arith.constant 0 : index
    %4 = vector.load %arg4[%c0_5, %c0_6] : memref<256x128xbf16, #tpu.memory_space<vmem>>, vector<256x128xbf16>
    %cst_7 = arith.constant dense<0.000000e+00> : vector<2x128xf32>
    %5 = tpu.matmul %3, %4, %cst_7 {dimension_numbers = #tpu.dot_dimension_numbers<[1], [0], [0], [1], [0, 0, 1, 1], [], []>} : vector<2x256xbf16>, vector<256x128xbf16>, vector<2x128xf32> -> vector<2x128xf32>
    %6 = arith.addf %2, %5 : vector<2x128xf32>
    %c0_8 = arith.constant 0 : index
    %c0_9 = arith.constant 0 : index
    %7 = vector.load %arg5[%c0_8, %c0_9] : memref<1x128xf32, #tpu.memory_space<vmem>>, vector<1x128xf32>
    %8 = vector.broadcast %7 : vector<1x128xf32> to vector<2x128xf32>
    %9 = arith.addf %6, %8 : vector<2x128xf32>
    %10 = arith.truncf %9 : vector<2x128xf32> to vector<2x128xbf16>
    %c0_10 = arith.constant 0 : index
    %c0_11 = arith.constant 0 : index
    %11 = vector.load %arg6[%c0_10, %c0_11] : memref<2x128xbf16, #tpu.memory_space<vmem>>, vector<2x128xbf16>
    tpu.vector_store %arg6[%c0_10, %c0_11], %10 {strides = array<i32>} : memref<2x128xbf16, #tpu.memory_space<vmem>>, vector<2x128xbf16>,
    return
  }
  func.func @transform_0(%arg0: i32) -> (i32, i32) {
    %c0_i32 = arith.constant 0 : i32
    %c0_i32_0 = arith.constant 0 : i32
    return %arg0, %c0_i32 : i32, i32
  }
  func.func @transform_1(%arg0: i32) -> (i32, i32) {
    %c0_i32 = arith.constant 0 : i32
    %c0_i32_0 = arith.constant 0 : i32
    return %arg0, %c0_i32 : i32, i32
  }
  func.func @transform_2(%arg0: i32) -> (i32, i32) {
    %c0_i32 = arith.constant 0 : i32
    %c0_i32_0 = arith.constant 0 : i32
    %c0_i32_1 = arith.constant 0 : i32
    return %c0_i32, %c0_i32_0 : i32, i32
  }
  func.func @transform_3(%arg0: i32) -> (i32, i32) {
    %c0_i32 = arith.constant 0 : i32
    %c0_i32_0 = arith.constant 0 : i32
    %c0_i32_1 = arith.constant 0 : i32
    return %c0_i32, %c0_i32_0 : i32, i32
  }
  func.func @transform_4(%arg0: i32) -> (i32, i32) {
    %c0_i32 = arith.constant 0 : i32
    %c0_i32_0 = arith.constant 0 : i32
    %c0_i32_1 = arith.constant 0 : i32
    return %c0_i32, %c0_i32_0 : i32, i32
  }
  func.func @transform_5(%arg0: i32) -> (i32, i32) {
    %c0_i32 = arith.constant 0 : i32
    %c0_i32_0 = arith.constant 0 : i32
    return %arg0, %c0_i32 : i32, i32
  }
}

</mosaic_0001>

<llo_original>
// kernel: framework_forward.1
$region0: #{framework_forward.1}
  #allocation0 [shape = 'u32[]', space=smem, size = 0x4, offset = 0x4, fixed_abs, tag = 'smem constant byte address 0x4 - core index']
  #allocation1 [shape = 'u32[144,128]{1,0:T(1,128)}', space=vmem, size = 0x12000, scoped, tag = 'internal scratch']
  %s0 = inlined_call_operand.vmem [shape: bf16[2,1024], index: 0, kind: input, shape index: {}]
  %s1 = inlined_call_operand.vmem [shape: bf16[2,256], index: 1, kind: input, shape index: {}]
  %s2 = inlined_call_operand.vmem [shape: bf16[1024,128], index: 2, kind: input, shape index: {}]
  %s3 = inlined_call_operand.vmem [shape: bf16[256,128], index: 3, kind: input, shape index: {}]
  %s4 = inlined_call_operand.vmem [shape: f32[1,128], index: 4, kind: input, shape index: {}]
  %s5 = inlined_call_operand.vmem [shape: bf16[2,128], index: 5, kind: output, shape index: {}]
  %s6 = sld [smem:[#allocation0]]
  $region30: #{framework_forward.1} parent=0
    _
  %s8 = ssub.s32 1, %s6
  %s9 = scalar_select 0, %s8, %s6
  // Predicated region
  $region2: #{framework_forward.1} parent=0 // pred_check
    _
  $region3: #{framework_forward.1} parent=0 // pred_check_branch
    %11 = sbr.rel (0) target = $region5
  $region4: #{framework_forward.1} parent=0 // pred_region
    _
  $region5: #{framework_forward.1} parent=0 // pred_fallthru
    _
  // Predicated region
  $region6: #{framework_forward.1} parent=0 // pred_check
    _
  $region7: #{framework_forward.1} parent=0 // pred_check_branch
    %13 = sbr.rel (0) target = $region9
  $region8: #{framework_forward.1} parent=0 // pred_region
    _
  $region9: #{framework_forward.1} parent=0 // pred_fallthru
    _
  // Predicated region
  $region10: #{framework_forward.1} parent=0 // pred_check
    _
  $region11: #{framework_forward.1} parent=0 // pred_check_branch
    %15 = sbr.rel (0) target = $region13
  $region12: #{framework_forward.1} parent=0 // pred_region
    _
  $region13: #{framework_forward.1} parent=0 // pred_fallthru
    _
  // Predicated region
  $region14: #{framework_forward.1} parent=0 // pred_check
    _
  $region15: #{framework_forward.1} parent=0 // pred_check_branch
    %17 = sbr.rel (0) target = $region17
  $region16: #{framework_forward.1} parent=0 // pred_region
    _
  $region17: #{framework_forward.1} parent=0 // pred_fallthru
    _
  // Predicated region
  $region18: #{framework_forward.1} parent=0 // pred_check
    _
  $region19: #{framework_forward.1} parent=0 // pred_check_branch
    %19 = sbr.rel (0) target = $region21
  $region20: #{framework_forward.1} parent=0 // pred_region
    _
  $region21: #{framework_forward.1} parent=0 // pred_fallthru
    _
  %v21 = vld [vmem:[%s0] sm:$0xff]
  %v22 = vld [vmem:[%s2] sm:$0xf]
  %v23 = vld [vmem:[%s2 + $0x4] sm:$0xf]
  %v24 = vld [vmem:[%s2 + $0x8] sm:$0xf]
  %v25 = vld [vmem:[%s2 + $0xc] sm:$0xf]
  %v26 = vld [vmem:[%s2 + $0x10] sm:$0xf]
  %v27 = vld [vmem:[%s2 + $0x14] sm:$0xf]
  %v28 = vld [vmem:[%s2 + $0x18] sm:$0xf]
  %v29 = vld [vmem:[%s2 + $0x1c] sm:$0xf]
  %v30 = vld [vmem:[%s2 + $0x20] sm:$0xf]
  %v31 = vld [vmem:[%s2 + $0x24] sm:$0xf]
  %v32 = vld [vmem:[%s2 + $0x28] sm:$0xf]
  %v33 = vld [vmem:[%s2 + $0x2c] sm:$0xf]
  %v34 = vld [vmem:[%s2 + $0x30] sm:$0xf]
  %v35 = vld [vmem:[%s2 + $0x34] sm:$0xf]
  %v36 = vld [vmem:[%s2 + $0x38] sm:$0xf]
  %v37 = vld [vmem:[%s2 + $0x3c] sm:$0xf]
  %v38 = vld [vmem:[%s2 + $0x40] sm:$0xf]
  %v39 = vld [vmem:[%s2 + $0x44] sm:$0xf]
  %v40 = vld [vmem:[%s2 + $0x48] sm:$0xf]
  %v41 = vld [vmem:[%s2 + $0x4c] sm:$0xf]
  %v42 = vld [vmem:[%s2 + $0x50] sm:$0xf]
  %v43 = vld [vmem:[%s2 + $0x54] sm:$0xf]
  %v44 = vld [vmem:[%s2 + $0x58] sm:$0xf]
  %v45 = vld [vmem:[%s2 + $0x5c] sm:$0xf]
  %v46 = vld [vmem:[%s2 + $0x60] sm:$0xf]
  %v47 = vld [vmem:[%s2 + $0x64] sm:$0xf]
  %v48 = vld [vmem:[%s2 + $0x68] sm:$0xf]
  %v49 = vld [vmem:[%s2 + $0x6c] sm:$0xf]
  %v50 = vld [vmem:[%s2 + $0x70] sm:$0xf]
  %v51 = vld [vmem:[%s2 + $0x74] sm:$0xf]
  %v52 = vld [vmem:[%s2 + $0x78] sm:$0xf]
  %v53 = vld [vmem:[%s2 + $0x7c] sm:$0xf]
  %v54 = vld [vmem:[%s2 + $0x80] sm:$0xf]
  %v55 = vld [vmem:[%s2 + $0x84] sm:$0xf]
  %v56 = vld [vmem:[%s2 + $0x88] sm:$0xf]
  %v57 = vld [vmem:[%s2 + $0x8c] sm:$0xf]
  %v58 = vld [vmem:[%s2 + $0x90] sm:$0xf]
  %v59 = vld [vmem:[%s2 + $0x94] sm:$0xf]
  %v60 = vld [vmem:[%s2 + $0x98] sm:$0xf]
  %v61 = vld [vmem:[%s2 + $0x9c] sm:$0xf]
  %v62 = vld [vmem:[%s2 + $0xa0] sm:$0xf]
  %v63 = vld [vmem:[%s2 + $0xa4] sm:$0xf]
  %v64 = vld [vmem:[%s2 + $0xa8] sm:$0xf]
  %v65 = vld [vmem:[%s2 + $0xac] sm:$0xf]
  %v66 = vld [vmem:[%s2 + $0xb0] sm:$0xf]
  %v67 = vld [vmem:[%s2 + $0xb4] sm:$0xf]
  %v68 = vld [vmem:[%s2 + $0xb8] sm:$0xf]
  %v69 = vld [vmem:[%s2 + $0xbc] sm:$0xf]
  %v70 = vld [vmem:[%s2 + $0xc0] sm:$0xf]
  %v71 = vld [vmem:[%s2 + $0xc4] sm:$0xf]
  %v72 = vld [vmem:[%s2 + $0xc8] sm:$0xf]
  %v73 = vld [vmem:[%s2 + $0xcc] sm:$0xf]
  %v74 = vld [vmem:[%s2 + $0xd0] sm:$0xf]
  %v75 = vld [vmem:[%s2 + $0xd4] sm:$0xf]
  %v76 = vld [vmem:[%s2 + $0xd8] sm:$0xf]
  %v77 = vld [vmem:[%s2 + $0xdc] sm:$0xf]
  %v78 = vld [vmem:[%s2 + $0xe0] sm:$0xf]
  %v79 = vld [vmem:[%s2 + $0xe4] sm:$0xf]
  %v80 = vld [vmem:[%s2 + $0xe8] sm:$0xf]
  %v81 = vld [vmem:[%s2 + $0xec] sm:$0xf]
  %v82 = vld [vmem:[%s2 + $0xf0] sm:$0xf]
  %v83 = vld [vmem:[%s2 + $0xf4] sm:$0xf]
  %v84 = vld [vmem:[%s2 + $0xf8] sm:$0xf]
  %v85 = vld [vmem:[%s2 + $0xfc] sm:$0xf]
  %v86 = vld [vmem:[%s2 + $0x100] sm:$0xf]
  %v87 = vld [vmem:[%s2 + $0x104] sm:$0xf]
  %v88 = vld [vmem:[%s2 + $0x108] sm:$0xf]
  %v89 = vld [vmem:[%s2 + $0x10c] sm:$0xf]
  %v90 = vld [vmem:[%s2 + $0x110] sm:$0xf]
  %v91 = vld [vmem:[%s2 + $0x114] sm:$0xf]
  %v92 = vld [vmem:[%s2 + $0x118] sm:$0xf]
  %v93 = vld [vmem:[%s2 + $0x11c] sm:$0xf]
  %v94 = vld [vmem:[%s2 + $0x120] sm:$0xf]
  %v95 = vld [vmem:[%s2 + $0x124] sm:$0xf]
  %v96 = vld [vmem:[%s2 + $0x128] sm:$0xf]
  %v97 = vld [vmem:[%s2 + $0x12c] sm:$0xf]
  %v98 = vld [vmem:[%s2 + $0x130] sm:$0xf]
  %v99 = vld [vmem:[%s2 + $0x134] sm:$0xf]
  %v100 = vld [vmem:[%s2 + $0x138] sm:$0xf]
  %v101 = vld [vmem:[%s2 + $0x13c] sm:$0xf]
  %v102 = vld [vmem:[%s2 + $0x140] sm:$0xf]
  %v103 = vld [vmem:[%s2 + $0x144] sm:$0xf]
  %v104 = vld [vmem:[%s2 + $0x148] sm:$0xf]
  %v105 = vld [vmem:[%s2 + $0x14c] sm:$0xf]
  %v106 = vld [vmem:[%s2 + $0x150] sm:$0xf]
  %v107 = vld [vmem:[%s2 + $0x154] sm:$0xf]
  %v108 = vld [vmem:[%s2 + $0x158] sm:$0xf]
  %v109 = vld [vmem:[%s2 + $0x15c] sm:$0xf]
  %v110 = vld [vmem:[%s2 + $0x160] sm:$0xf]
  %v111 = vld [vmem:[%s2 + $0x164] sm:$0xf]
  %v112 = vld [vmem:[%s2 + $0x168] sm:$0xf]
  %v113 = vld [vmem:[%s2 + $0x16c] sm:$0xf]
  %v114 = vld [vmem:[%s2 + $0x170] sm:$0xf]
  %v115 = vld [vmem:[%s2 + $0x174] sm:$0xf]
  %v116 = vld [vmem:[%s2 + $0x178] sm:$0xf]
  %v117 = vld [vmem:[%s2 + $0x17c] sm:$0xf]
  %v118 = vld [vmem:[%s2 + $0x180] sm:$0xf]
  %v119 = vld [vmem:[%s2 + $0x184] sm:$0xf]
  %v120 = vld [vmem:[%s2 + $0x188] sm:$0xf]
  %v121 = vld [vmem:[%s2 + $0x18c] sm:$0xf]
  %v122 = vld [vmem:[%s2 + $0x190] sm:$0xf]
  %v123 = vld [vmem:[%s2 + $0x194] sm:$0xf]
  %v124 = vld [vmem:[%s2 + $0x198] sm:$0xf]
  %v125 = vld [vmem:[%s2 + $0x19c] sm:$0xf]
  %v126 = vld [vmem:[%s2 + $0x1a0] sm:$0xf]
  %v127 = vld [vmem:[%s2 + $0x1a4] sm:$0xf]
  %v128 = vld [vmem:[%s2 + $0x1a8] sm:$0xf]
  %v129 = vld [vmem:[%s2 + $0x1ac] sm:$0xf]
  %v130 = vld [vmem:[%s2 + $0x1b0] sm:$0xf]
  %v131 = vld [vmem:[%s2 + $0x1b4] sm:$0xf]
  %v132 = vld [vmem:[%s2 + $0x1b8] sm:$0xf]
  %v133 = vld [vmem:[%s2 + $0x1bc] sm:$0xf]
  %v134 = vld [vmem:[%s2 + $0x1c0] sm:$0xf]
  %v135 = vld [vmem:[%s2 + $0x1c4] sm:$0xf]
  %v136 = vld [vmem:[%s2 + $0x1c8] sm:$0xf]
  %v137 = vld [vmem:[%s2 + $0x1cc] sm:$0xf]
  %v138 = vld [vmem:[%s2 + $0x1d0] sm:$0xf]
  %v139 = vld [vmem:[%s2 + $0x1d4] sm:$0xf]
  %v140 = vld [vmem:[%s2 + $0x1d8] sm:$0xf]
  %v141 = vld [vmem:[%s2 + $0x1dc] sm:$0xf]
  %v142 = vld [vmem:[%s2 + $0x1e0] sm:$0xf]
  %v143 = vld [vmem:[%s2 + $0x1e4] sm:$0xf]
  %v144 = vld [vmem:[%s2 + $0x1e8] sm:$0xf]
  %v145 = vld [vmem:[%s2 + $0x1ec] sm:$0xf]
  %v146 = vld [vmem:[%s2 + $0x1f0] sm:$0xf]
  %v147 = vld [vmem:[%s2 + $0x1f4] sm:$0xf]
  %v148 = vld [vmem:[%s2 + $0x1f8] sm:$0xf]
  %v149 = vld [vmem:[%s2 + $0x1fc] sm:$0xf]
  %v150 = vld [vmem:[%s1] sm:$0x3]
  %v151 = vld [vmem:[%s3] sm:$0xf]
  %v152 = vld [vmem:[%s3 + $0x4] sm:$0xf]
  %v153 = vld [vmem:[%s3 + $0x8] sm:$0xf]
  %v154 = vld [vmem:[%s3 + $0xc] sm:$0xf]
  %v155 = vld [vmem:[%s3 + $0x10] sm:$0xf]
  %v156 = vld [vmem:[%s3 + $0x14] sm:$0xf]
  %v157 = vld [vmem:[%s3 + $0x18] sm:$0xf]
  %v158 = vld [vmem:[%s3 + $0x1c] sm:$0xf]
  %v159 = vld [vmem:[%s3 + $0x20] sm:$0xf]
  %v160 = vld [vmem:[%s3 + $0x24] sm:$0xf]
  %v161 = vld [vmem:[%s3 + $0x28] sm:$0xf]
  %v162 = vld [vmem:[%s3 + $0x2c] sm:$0xf]
  %v163 = vld [vmem:[%s3 + $0x30] sm:$0xf]
  %v164 = vld [vmem:[%s3 + $0x34] sm:$0xf]
  %v165 = vld [vmem:[%s3 + $0x38] sm:$0xf]
  %v166 = vld [vmem:[%s3 + $0x3c] sm:$0xf]
  %v167 = vld [vmem:[%s3 + $0x40] sm:$0xf]
  %v168 = vld [vmem:[%s3 + $0x44] sm:$0xf]
  %v169 = vld [vmem:[%s3 + $0x48] sm:$0xf]
  %v170 = vld [vmem:[%s3 + $0x4c] sm:$0xf]
  %v171 = vld [vmem:[%s3 + $0x50] sm:$0xf]
  %v172 = vld [vmem:[%s3 + $0x54] sm:$0xf]
  %v173 = vld [vmem:[%s3 + $0x58] sm:$0xf]
  %v174 = vld [vmem:[%s3 + $0x5c] sm:$0xf]
  %v175 = vld [vmem:[%s3 + $0x60] sm:$0xf]
  %v176 = vld [vmem:[%s3 + $0x64] sm:$0xf]
  %v177 = vld [vmem:[%s3 + $0x68] sm:$0xf]
  %v178 = vld [vmem:[%s3 + $0x6c] sm:$0xf]
  %v179 = vld [vmem:[%s3 + $0x70] sm:$0xf]
  %v180 = vld [vmem:[%s3 + $0x74] sm:$0xf]
  %v181 = vld [vmem:[%s3 + $0x78] sm:$0xf]
  %v182 = vld [vmem:[%s3 + $0x7c] sm:$0xf]
  %v185 = vunpack.c.l.s4 1966171168
  %v186 = vunpack.c.0.s8 %v185
  %v187 = vlaneseq
  %v188 = vshrl.u32 %v187, 7
  %v189 = vsub.s32 %v186, %v188
  %v190 = vrot.slane %v150, %v189
  %v191 = vcombine.high %v190, %v190
  %v193 = vunpack.c.l.s4 1966171168
  %v194 = vunpack.c.0.s8 %v193
  %v195 = vlaneseq
  %v196 = vshrl.u32 %v195, 7
  %v197 = vsub.s32 %v194, %v196
  %v198 = vrot.slane %v190, %v197
  %v200 = vunpack.c.l.s4 1966171168
  %v201 = vunpack.c.0.s8 %v200
  %v202 = vlaneseq
  %v203 = vshrl.u32 %v202, 7
  %v204 = vsub.s32 %v201, %v203
  %v205 = vrot.slane %v191, %v204
  %v240 = vunpack.c.l.b16 %v151
  %v241 = vunpack.c.l.b16 %v152
  %v242 = vunpack.c.l.b16 %v153
  %v243 = vunpack.c.l.b16 %v154
  %v244 = vunpack.c.l.b16 %v155
  %v245 = vunpack.c.l.b16 %v156
  %v246 = vunpack.c.l.b16 %v157
  %v247 = vunpack.c.l.b16 %v158
  %v248 = vunpack.c.l.b16 %v159
  %v249 = vunpack.c.l.b16 %v160
  %v250 = vunpack.c.l.b16 %v161
  %v251 = vunpack.c.l.b16 %v162
  %v252 = vunpack.c.l.b16 %v163
  %v253 = vunpack.c.l.b16 %v164
  %v254 = vunpack.c.l.b16 %v165
  %v255 = vunpack.c.l.b16 %v166
  %v256 = vunpack.c.l.b16 %v167
  %v257 = vunpack.c.l.b16 %v168
  %v258 = vunpack.c.l.b16 %v169
  %v259 = vunpack.c.l.b16 %v170
  %v260 = vunpack.c.l.b16 %v171
  %v261 = vunpack.c.l.b16 %v172
  %v262 = vunpack.c.l.b16 %v173
  %v263 = vunpack.c.l.b16 %v174
  %v264 = vunpack.c.l.b16 %v175
  %v265 = vunpack.c.l.b16 %v176
  %v266 = vunpack.c.l.b16 %v177
  %v267 = vunpack.c.l.b16 %v178
  %v268 = vunpack.c.l.b16 %v179
  %v269 = vunpack.c.l.b16 %v180
  %v270 = vunpack.c.l.b16 %v181
  %v271 = vunpack.c.l.b16 %v182
  %v272 = vpack.c.b16 %v241, %v240
  %v273 = vpack.c.b16 %v243, %v242
  %v274 = vpack.c.b16 %v245, %v244
  %v275 = vpack.c.b16 %v247, %v246
  %v276 = vpack.c.b16 %v249, %v248
  %v277 = vpack.c.b16 %v251, %v250
  %v278 = vpack.c.b16 %v253, %v252
  %v279 = vpack.c.b16 %v255, %v254
  %v280 = vpack.c.b16 %v257, %v256
  %v281 = vpack.c.b16 %v259, %v258
  %v282 = vpack.c.b16 %v261, %v260
  %v283 = vpack.c.b16 %v263, %v262
  %v284 = vpack.c.b16 %v265, %v264
  %v285 = vpack.c.b16 %v267, %v266
  %v286 = vpack.c.b16 %v269, %v268
  %v287 = vpack.c.b16 %v271, %v270
  %304 = vmatprep.subr.bf16.mxu0 0
  %305 = vmatpush1.bf16.msra.mxu0 %v272
  %306 = vmatprep.subr.bf16.mxu0 0
  %307 = vmatpush1.bf16.msra.mxu0 %v273
  %308 = vmatprep.subr.bf16.mxu0 0
  %309 = vmatpush1.bf16.msra.mxu0 %v274
  %310 = vmatprep.subr.bf16.mxu0 0
  %311 = vmatpush1.bf16.msra.mxu0 %v275
  %312 = vmatprep.subr.bf16.mxu0 0
  %313 = vmatpush1.bf16.msra.mxu0 %v276
  %314 = vmatprep.subr.bf16.mxu0 0
  %315 = vmatpush1.bf16.msra.mxu0 %v277
  %316 = vmatprep.subr.bf16.mxu0 0
  %317 = vmatpush1.bf16.msra.mxu0 %v278
  %318 = vmatprep.subr.bf16.mxu0 0
  %319 = vmatpush1.bf16.msra.mxu0 %v279
  %320 = vmatprep.subr.bf16.mxu0 0
  %321 = vmatpush1.bf16.msra.mxu0 %v280
  %322 = vmatprep.subr.bf16.mxu0 0
  %323 = vmatpush1.bf16.msra.mxu0 %v281
  %324 = vmatprep.subr.bf16.mxu0 0
  %325 = vmatpush1.bf16.msra.mxu0 %v282
  %326 = vmatprep.subr.bf16.mxu0 0
  %327 = vmatpush1.bf16.msra.mxu0 %v283
  %328 = vmatprep.subr.bf16.mxu0 0
  %329 = vmatpush1.bf16.msra.mxu0 %v284
  %330 = vmatprep.subr.bf16.mxu0 0
  %331 = vmatpush1.bf16.msra.mxu0 %v285
  %332 = vmatprep.subr.bf16.mxu0 0
  %333 = vmatpush1.bf16.msra.mxu0 %v286
  %334 = vmatprep.subr.bf16.mxu0 0
  %335 = vmatpush1.bf16.msra.mxu0 %v287
  %336 = vmatprep.mubr.bf16.mxu0 %v205
  %337 = vmatmul.mubr.bf16.gmra.mrb[0].mxu0 %v198
  %v338 = vpop.f32.mrb[0].mxu0
  %v339 = vadd.f32 0.0, %v338
  %v340 = vpop.f32.mrb[0].mxu0
  %v341 = vpop.f32.mrb[0].mxu0
  %v342 = vpop.f32.mrb[0].mxu0
  %343 = vdwg.mxu0
  %v345 = vcombine.high %v21, %v21
  %v347 = vunpack.c.l.s4 1966171168
  %v348 = vunpack.c.0.s8 %v347
  %v349 = vlaneseq
  %v350 = vshrl.u32 %v349, 7
  %v351 = vsub.s32 %v348, %v350
  %v352 = vrot.slane %v21, %v351
  %v354 = vunpack.c.l.s4 1966171168
  %v355 = vunpack.c.0.s8 %v354
  %v356 = vlaneseq
  %v357 = vshrl.u32 %v356, 7
  %v358 = vsub.s32 %v355, %v357
  %v359 = vrot.slane %v345, %v358
  %v360 = vcombine.high %v352, %v352
  %v361 = vcombine.high %v359, %v359
  %v363 = vunpack.c.l.s4 1966171168
  %v364 = vunpack.c.0.s8 %v363
  %v365 = vlaneseq
  %v366 = vshrl.u32 %v365, 7
  %v367 = vsub.s32 %v364, %v366
  %v368 = vrot.slane %v352, %v367
  %v370 = vunpack.c.l.s4 1966171168
  %v371 = vunpack.c.0.s8 %v370
  %v372 = vlaneseq
  %v373 = vshrl.u32 %v372, 7
  %v374 = vsub.s32 %v371, %v373
  %v375 = vrot.slane %v359, %v374
  %v377 = vunpack.c.l.s4 1966171168
  %v378 = vunpack.c.0.s8 %v377
  %v379 = vlaneseq
  %v380 = vshrl.u32 %v379, 7
  %v381 = vsub.s32 %v378, %v380
  %v382 = vrot.slane %v360, %v381
  %v384 = vunpack.c.l.s4 1966171168
  %v385 = vunpack.c.0.s8 %v384
  %v386 = vlaneseq
  %v387 = vshrl.u32 %v386, 7
  %v388 = vsub.s32 %v385, %v387
  %v389 = vrot.slane %v361, %v388
  %v390 = vcombine.high %v368, %v368
  %v391 = vcombine.high %v375, %v375
  %v392 = vcombine.high %v382, %v382
  %v393 = vcombine.high %v389, %v389
  %v530 = vunpack.c.l.b16 %v22
  %v531 = vunpack.c.l.b16 %v23
  %v532 = vunpack.c.l.b16 %v24
  %v533 = vunpack.c.l.b16 %v25
  %v534 = vunpack.c.l.b16 %v26
  %v535 = vunpack.c.l.b16 %v27
  %v536 = vunpack.c.l.b16 %v28
  %v537 = vunpack.c.l.b16 %v29
  %v538 = vunpack.c.l.b16 %v30
  %v539 = vunpack.c.l.b16 %v31
  %v540 = vunpack.c.l.b16 %v32
  %v541 = vunpack.c.l.b16 %v33
  %v542 = vunpack.c.l.b16 %v34
  %v543 = vunpack.c.l.b16 %v35
  %v544 = vunpack.c.l.b16 %v36
  %v545 = vunpack.c.l.b16 %v37
  %v546 = vunpack.c.l.b16 %v38
  %v547 = vunpack.c.l.b16 %v39
  %v548 = vunpack.c.l.b16 %v40
  %v549 = vunpack.c.l.b16 %v41
  %v550 = vunpack.c.l.b16 %v42
  %v551 = vunpack.c.l.b16 %v43
  %v552 = vunpack.c.l.b16 %v44
  %v553 = vunpack.c.l.b16 %v45
  %v554 = vunpack.c.l.b16 %v46
  %v555 = vunpack.c.l.b16 %v47
  %v556 = vunpack.c.l.b16 %v48
  %v557 = vunpack.c.l.b16 %v49
  %v558 = vunpack.c.l.b16 %v50
  %v559 = vunpack.c.l.b16 %v51
  %v560 = vunpack.c.l.b16 %v52
  %v561 = vunpack.c.l.b16 %v53
  %v562 = vunpack.c.l.b16 %v54
  %v563 = vunpack.c.l.b16 %v55
  %v564 = vunpack.c.l.b16 %v56
  %v565 = vunpack.c.l.b16 %v57
  %v566 = vunpack.c.l.b16 %v58
  %v567 = vunpack.c.l.b16 %v59
  %v568 = vunpack.c.l.b16 %v60
  %v569 = vunpack.c.l.b16 %v61
  %v570 = vunpack.c.l.b16 %v62
  %v571 = vunpack.c.l.b16 %v63
  %v572 = vunpack.c.l.b16 %v64
  %v573 = vunpack.c.l.b16 %v65
  %v574 = vunpack.c.l.b16 %v66
  %v575 = vunpack.c.l.b16 %v67
  %v576 = vunpack.c.l.b16 %v68
  %v577 = vunpack.c.l.b16 %v69
  %v578 = vunpack.c.l.b16 %v70
  %v579 = vunpack.c.l.b16 %v71
  %v580 = vunpack.c.l.b16 %v72
  %v581 = vunpack.c.l.b16 %v73
  %v582 = vunpack.c.l.b16 %v74
  %v583 = vunpack.c.l.b16 %v75
  %v584 = vunpack.c.l.b16 %v76
  %v585 = vunpack.c.l.b16 %v77
  %v586 = vunpack.c.l.b16 %v78
  %v587 = vunpack.c.l.b16 %v79
  %v588 = vunpack.c.l.b16 %v80
  %v589 = vunpack.c.l.b16 %v81
  %v590 = vunpack.c.l.b16 %v82
  %v591 = vunpack.c.l.b16 %v83
  %v592 = vunpack.c.l.b16 %v84
  %v593 = vunpack.c.l.b16 %v85
  %v594 = vunpack.c.l.b16 %v86
  %v595 = vunpack.c.l.b16 %v87
  %v596 = vunpack.c.l.b16 %v88
  %v597 = vunpack.c.l.b16 %v89
  %v598 = vunpack.c.l.b16 %v90
  %v599 = vunpack.c.l.b16 %v91
  %v600 = vunpack.c.l.b16 %v92
  %v601 = vunpack.c.l.b16 %v93
  %v602 = vunpack.c.l.b16 %v94
  %v603 = vunpack.c.l.b16 %v95
  %v604 = vunpack.c.l.b16 %v96
  %v605 = vunpack.c.l.b16 %v97
  %v606 = vunpack.c.l.b16 %v98
  %v607 = vunpack.c.l.b16 %v99
  %v608 = vunpack.c.l.b16 %v100
  %v609 = vunpack.c.l.b16 %v101
  %v610 = vunpack.c.l.b16 %v102
  %v611 = vunpack.c.l.b16 %v103
  %v612 = vunpack.c.l.b16 %v104
  %v613 = vunpack.c.l.b16 %v105
  %v614 = vunpack.c.l.b16 %v106
  %v615 = vunpack.c.l.b16 %v107
  %v616 = vunpack.c.l.b16 %v108
  %v617 = vunpack.c.l.b16 %v109
  %v618 = vunpack.c.l.b16 %v110
  %v619 = vunpack.c.l.b16 %v111
  %v620 = vunpack.c.l.b16 %v112
  %v621 = vunpack.c.l.b16 %v113
  %v622 = vunpack.c.l.b16 %v114
  %v623 = vunpack.c.l.b16 %v115
  %v624 = vunpack.c.l.b16 %v116
  %v625 = vunpack.c.l.b16 %v117
  %v626 = vunpack.c.l.b16 %v118
  %v627 = vunpack.c.l.b16 %v119
  %v628 = vunpack.c.l.b16 %v120
  %v629 = vunpack.c.l.b16 %v121
  %v630 = vunpack.c.l.b16 %v122
  %v631 = vunpack.c.l.b16 %v123
  %v632 = vunpack.c.l.b16 %v124
  %v633 = vunpack.c.l.b16 %v125
  %v634 = vunpack.c.l.b16 %v126
  %v635 = vunpack.c.l.b16 %v127
  %v636 = vunpack.c.l.b16 %v128
  %v637 = vunpack.c.l.b16 %v129
  %v638 = vunpack.c.l.b16 %v130
  %v639 = vunpack.c.l.b16 %v131
  %v640 = vunpack.c.l.b16 %v132
  %v641 = vunpack.c.l.b16 %v133
  %v642 = vunpack.c.l.b16 %v134
  %v643 = vunpack.c.l.b16 %v135
  %v644 = vunpack.c.l.b16 %v136
  %v645 = vunpack.c.l.b16 %v137
  %v646 = vunpack.c.l.b16 %v138
  %v647 = vunpack.c.l.b16 %v139
  %v648 = vunpack.c.l.b16 %v140
  %v649 = vunpack.c.l.b16 %v141
  %v650 = vunpack.c.l.b16 %v142
  %v651 = vunpack.c.l.b16 %v143
  %v652 = vunpack.c.l.b16 %v144
  %v653 = vunpack.c.l.b16 %v145
  %v654 = vunpack.c.l.b16 %v146
  %v655 = vunpack.c.l.b16 %v147
  %v656 = vunpack.c.l.b16 %v148
  %v657 = vunpack.c.l.b16 %v149
  %v658 = vpack.c.b16 %v531, %v530
  %v659 = vpack.c.b16 %v533, %v532
  %v660 = vpack.c.b16 %v535, %v534
  %v661 = vpack.c.b16 %v537, %v536
  %v662 = vpack.c.b16 %v539, %v538
  %v663 = vpack.c.b16 %v541, %v540
  %v664 = vpack.c.b16 %v543, %v542
  %v665 = vpack.c.b16 %v545, %v544
  %v666 = vpack.c.b16 %v547, %v546
  %v667 = vpack.c.b16 %v549, %v548
  %v668 = vpack.c.b16 %v551, %v550
  %v669 = vpack.c.b16 %v553, %v552
  %v670 = vpack.c.b16 %v555, %v554
  %v671 = vpack.c.b16 %v557, %v556
  %v672 = vpack.c.b16 %v559, %v558
  %v673 = vpack.c.b16 %v561, %v560
  %v674 = vpack.c.b16 %v563, %v562
  %v675 = vpack.c.b16 %v565, %v564
  %v676 = vpack.c.b16 %v567, %v566
  %v677 = vpack.c.b16 %v569, %v568
  %v678 = vpack.c.b16 %v571, %v570
  %v679 = vpack.c.b16 %v573, %v572
  %v680 = vpack.c.b16 %v575, %v574
  %v681 = vpack.c.b16 %v577, %v576
  %v682 = vpack.c.b16 %v579, %v578
  %v683 = vpack.c.b16 %v581, %v580
  %v684 = vpack.c.b16 %v583, %v582
  %v685 = vpack.c.b16 %v585, %v584
  %v686 = vpack.c.b16 %v587, %v586
  %v687 = vpack.c.b16 %v589, %v588
  %v688 = vpack.c.b16 %v591, %v590
  %v689 = vpack.c.b16 %v593, %v592
  %v690 = vpack.c.b16 %v595, %v594
  %v691 = vpack.c.b16 %v597, %v596
  %v692 = vpack.c.b16 %v599, %v598
  %v693 = vpack.c.b16 %v601, %v600
  %v694 = vpack.c.b16 %v603, %v602
  %v695 = vpack.c.b16 %v605, %v604
  %v696 = vpack.c.b16 %v607, %v606
  %v697 = vpack.c.b16 %v609, %v608
  %v698 = vpack.c.b16 %v611, %v610
  %v699 = vpack.c.b16 %v613, %v612
  %v700 = vpack.c.b16 %v615, %v614
  %v701 = vpack.c.b16 %v617, %v616
  %v702 = vpack.c.b16 %v619, %v618
  %v703 = vpack.c.b16 %v621, %v620
  %v704 = vpack.c.b16 %v623, %v622
  %v705 = vpack.c.b16 %v625, %v624
  %v706 = vpack.c.b16 %v627, %v626
  %v707 = vpack.c.b16 %v629, %v628
  %v708 = vpack.c.b16 %v631, %v630
  %v709 = vpack.c.b16 %v633, %v632
  %v710 = vpack.c.b16 %v635, %v634
  %v711 = vpack.c.b16 %v637, %v636
  %v712 = vpack.c.b16 %v639, %v638
  %v713 = vpack.c.b16 %v641, %v640
  %v714 = vpack.c.b16 %v643, %v642
  %v715 = vpack.c.b16 %v645, %v644
  %v716 = vpack.c.b16 %v647, %v646
  %v717 = vpack.c.b16 %v649, %v648
  %v718 = vpack.c.b16 %v651, %v650
  %v719 = vpack.c.b16 %v653, %v652
  %v720 = vpack.c.b16 %v655, %v654
  %v721 = vpack.c.b16 %v657, %v656
  %786 = vmatprep.subr.bf16.mxu0 0
  %787 = vmatpush1.bf16.msra.mxu0 %v658
  %788 = vmatprep.subr.bf16.mxu0 0
  %789 = vmatpush1.bf16.msra.mxu0 %v659
  %790 = vmatprep.subr.bf16.mxu0 0
  %791 = vmatpush1.bf16.msra.mxu0 %v660
  %792 = vmatprep.subr.bf16.mxu0 0
  %793 = vmatpush1.bf16.msra.mxu0 %v661
  %794 = vmatprep.subr.bf16.mxu0 0
  %795 = vmatpush1.bf16.msra.mxu0 %v662
  %796 = vmatprep.subr.bf16.mxu0 0
  %797 = vmatpush1.bf16.msra.mxu0 %v663
  %798 = vmatprep.subr.bf16.mxu0 0
  %799 = vmatpush1.bf16.msra.mxu0 %v664
  %800 = vmatprep.subr.bf16.mxu0 0
  %801 = vmatpush1.bf16.msra.mxu0 %v665
  %802 = vmatprep.subr.bf16.mxu0 0
  %803 = vmatpush1.bf16.msra.mxu0 %v666
  %804 = vmatprep.subr.bf16.mxu0 0
  %805 = vmatpush1.bf16.msra.mxu0 %v667
  %806 = vmatprep.subr.bf16.mxu0 0
  %807 = vmatpush1.bf16.msra.mxu0 %v668
  %808 = vmatprep.subr.bf16.mxu0 0
  %809 = vmatpush1.bf16.msra.mxu0 %v669
  %810 = vmatprep.subr.bf16.mxu0 0
  %811 = vmatpush1.bf16.msra.mxu0 %v670
  %812 = vmatprep.subr.bf16.mxu0 0
  %813 = vmatpush1.bf16.msra.mxu0 %v671
  %814 = vmatprep.subr.bf16.mxu0 0
  %815 = vmatpush1.bf16.msra.mxu0 %v672
  %816 = vmatprep.subr.bf16.mxu0 0
  %817 = vmatpush1.bf16.msra.mxu0 %v673
  %818 = vmatprep.mubr.bf16.mxu0 %v382
  %819 = vmatmul.mubr.bf16.gmra.mrb[0].mxu0 %v368
  %v820 = vpop.f32.mrb[0].mxu0
  %v821 = vadd.f32 %v339, %v820
  %v822 = vpop.f32.mrb[0].mxu0
  %v823 = vpop.f32.mrb[0].mxu0
  %v824 = vpop.f32.mrb[0].mxu0
  %825 = vdwg.mxu0
  %826 = vmatprep.subr.bf16.mxu0 0
  %827 = vmatpush1.bf16.msra.mxu0 %v674
  %828 = vmatprep.subr.bf16.mxu0 0
  %829 = vmatpush1.bf16.msra.mxu0 %v675
  %830 = vmatprep.subr.bf16.mxu0 0
  %831 = vmatpush1.bf16.msra.mxu0 %v676
  %832 = vmatprep.subr.bf16.mxu0 0
  %833 = vmatpush1.bf16.msra.mxu0 %v677
  %834 = vmatprep.subr.bf16.mxu0 0
  %835 = vmatpush1.bf16.msra.mxu0 %v678
  %836 = vmatprep.subr.bf16.mxu0 0
  %837 = vmatpush1.bf16.msra.mxu0 %v679
  %838 = vmatprep.subr.bf16.mxu0 0
  %839 = vmatpush1.bf16.msra.mxu0 %v680
  %840 = vmatprep.subr.bf16.mxu0 0
  %841 = vmatpush1.bf16.msra.mxu0 %v681
  %842 = vmatprep.subr.bf16.mxu0 0
  %843 = vmatpush1.bf16.msra.mxu0 %v682
  %844 = vmatprep.subr.bf16.mxu0 0
  %845 = vmatpush1.bf16.msra.mxu0 %v683
  %846 = vmatprep.subr.bf16.mxu0 0
  %847 = vmatpush1.bf16.msra.mxu0 %v684
  %848 = vmatprep.subr.bf16.mxu0 0
  %849 = vmatpush1.bf16.msra.mxu0 %v685
  %850 = vmatprep.subr.bf16.mxu0 0
  %851 = vmatpush1.bf16.msra.mxu0 %v686
  %852 = vmatprep.subr.bf16.mxu0 0
  %853 = vmatpush1.bf16.msra.mxu0 %v687
  %854 = vmatprep.subr.bf16.mxu0 0
  %855 = vmatpush1.bf16.msra.mxu0 %v688
  %856 = vmatprep.subr.bf16.mxu0 0
  %857 = vmatpush1.bf16.msra.mxu0 %v689
  %858 = vmatprep.mubr.bf16.mxu0 %v392
  %859 = vmatmul.mubr.bf16.gmra.mrb[0].mxu0 %v390
  %v860 = vpop.f32.mrb[0].mxu0
  %v861 = vadd.f32 %v821, %v860
  %v862 = vpop.f32.mrb[0].mxu0
  %v863 = vpop.f32.mrb[0].mxu0
  %v864 = vpop.f32.mrb[0].mxu0
  %865 = vdwg.mxu0
  %866 = vmatprep.subr.bf16.mxu0 0
  %867 = vmatpush1.bf16.msra.mxu0 %v690
  %868 = vmatprep.subr.bf16.mxu0 0
  %869 = vmatpush1.bf16.msra.mxu0 %v691
  %870 = vmatprep.subr.bf16.mxu0 0
  %871 = vmatpush1.bf16.msra.mxu0 %v692
  %872 = vmatprep.subr.bf16.mxu0 0
  %873 = vmatpush1.bf16.msra.mxu0 %v693
  %874 = vmatprep.subr.bf16.mxu0 0
  %875 = vmatpush1.bf16.msra.mxu0 %v694
  %876 = vmatprep.subr.bf16.mxu0 0
  %877 = vmatpush1.bf16.msra.mxu0 %v695
  %878 = vmatprep.subr.bf16.mxu0 0
  %879 = vmatpush1.bf16.msra.mxu0 %v696
  %880 = vmatprep.subr.bf16.mxu0 0
  %881 = vmatpush1.bf16.msra.mxu0 %v697
  %882 = vmatprep.subr.bf16.mxu0 0
  %883 = vmatpush1.bf16.msra.mxu0 %v698
  %884 = vmatprep.subr.bf16.mxu0 0
  %885 = vmatpush1.bf16.msra.mxu0 %v699
  %886 = vmatprep.subr.bf16.mxu0 0
  %887 = vmatpush1.bf16.msra.mxu0 %v700
  %888 = vmatprep.subr.bf16.mxu0 0
  %889 = vmatpush1.bf16.msra.mxu0 %v701
  %890 = vmatprep.subr.bf16.mxu0 0
  %891 = vmatpush1.bf16.msra.mxu0 %v702
  %892 = vmatprep.subr.bf16.mxu0 0
  %893 = vmatpush1.bf16.msra.mxu0 %v703
  %894 = vmatprep.subr.bf16.mxu0 0
  %895 = vmatpush1.bf16.msra.mxu0 %v704
  %896 = vmatprep.subr.bf16.mxu0 0
  %897 = vmatpush1.bf16.msra.mxu0 %v705
  %898 = vmatprep.mubr.bf16.mxu0 %v389
  %899 = vmatmul.mubr.bf16.gmra.mrb[0].mxu0 %v375
  %v900 = vpop.f32.mrb[0].mxu0
  %v901 = vadd.f32 %v861, %v900
  %v902 = vpop.f32.mrb[0].mxu0
  %v903 = vpop.f32.mrb[0].mxu0
  %v904 = vpop.f32.mrb[0].mxu0
  %905 = vdwg.mxu0
  %906 = vmatprep.subr.bf16.mxu0 0
  %907 = vmatpush1.bf16.msra.mxu0 %v706
  %908 = vmatprep.subr.bf16.mxu0 0
  %909 = vmatpush1.bf16.msra.mxu0 %v707
  %910 = vmatprep.subr.bf16.mxu0 0
  %911 = vmatpush1.bf16.msra.mxu0 %v708
  %912 = vmatprep.subr.bf16.mxu0 0
  %913 = vmatpush1.bf16.msra.mxu0 %v709
  %914 = vmatprep.subr.bf16.mxu0 0
  %915 = vmatpush1.bf16.msra.mxu0 %v710
  %916 = vmatprep.subr.bf16.mxu0 0
  %917 = vmatpush1.bf16.msra.mxu0 %v711
  %918 = vmatprep.subr.bf16.mxu0 0
  %919 = vmatpush1.bf16.msra.mxu0 %v712
  %920 = vmatprep.subr.bf16.mxu0 0
  %921 = vmatpush1.bf16.msra.mxu0 %v713
  %922 = vmatprep.subr.bf16.mxu0 0
  %923 = vmatpush1.bf16.msra.mxu0 %v714
  %924 = vmatprep.subr.bf16.mxu0 0
  %925 = vmatpush1.bf16.msra.mxu0 %v715
  %926 = vmatprep.subr.bf16.mxu0 0
  %927 = vmatpush1.bf16.msra.mxu0 %v716
  %928 = vmatprep.subr.bf16.mxu0 0
  %929 = vmatpush1.bf16.msra.mxu0 %v717
  %930 = vmatprep.subr.bf16.mxu0 0
  %931 = vmatpush1.bf16.msra.mxu0 %v718
  %932 = vmatprep.subr.bf16.mxu0 0
  %933 = vmatpush1.bf16.msra.mxu0 %v719
  %934 = vmatprep.subr.bf16.mxu0 0
  %935 = vmatpush1.bf16.msra.mxu0 %v720
  %936 = vmatprep.subr.bf16.mxu0 0
  %937 = vmatpush1.bf16.msra.mxu0 %v721
  %938 = vmatprep.mubr.bf16.mxu0 %v393
  %939 = vmatmul.mubr.bf16.gmra.mrb[0].mxu0 %v391
  %v940 = vpop.f32.mrb[0].mxu0
  %v941 = vadd.f32 %v901, %v940
  %v942 = vpop.f32.mrb[0].mxu0
  %v943 = vpop.f32.mrb[0].mxu0
  %v944 = vpop.f32.mrb[0].mxu0
  %945 = vdwg.mxu0
  %v946 = vld [vmem:[%s4] sm:$0x1]
  %v948 = vlaneseq
  %v949 = vshrl.u32 %v948, 7
  %v950 = vsub.s32 0, %v949
  %v951 = vrot.slane %v946, %v950
  %v953 = vadd.f32 %v941, %v951
  %v954 = vpack.c.bf16 %v953, %v953
  %955 = vst [vmem:[%s5] sm:$0x1] %v954
  // Predicated region
  $region22: #{framework_forward.1} parent=0 // pred_check
    _
  $region23: #{framework_forward.1} parent=0 // pred_check_branch
    %957 = sbr.rel (0) target = $region25
  $region24: #{framework_forward.1} parent=0 // pred_region
    _
  $region25: #{framework_forward.1} parent=0 // pred_fallthru
    _
  // Predicated region
  $region26: #{framework_forward.1} parent=0 // pred_check
    _
  $region27: #{framework_forward.1} parent=0 // pred_check_branch
    %959 = sbr.rel (0) target = $region29
  $region28: #{framework_forward.1} parent=0 // pred_region
    _
  $region29: #{framework_forward.1} parent=0 // pred_fallthru
    _

</llo_original>
